<compile_context>
chip_gen: v7x
topology: tpu7x:2x2x1
jax: 0.10.0
libtpu: 0.0.40
codegen_flags: <defaults>
</compile_context>

<pallas_src>
import jax
import jax.numpy as jnp
from jax.experimental import pallas as pl
from jax.experimental.pallas import tpu as pltpu


def _round_up(x, m):
    return (x + m - 1) // m * m


def _bert_self_output_kernel(x_ref, res_ref, w_ref, p_ref, o_ref):
    # x_ref:   (TM, H) tile of hidden_states (native dtype)
    # res_ref: (TM, H) tile of input_tensor  (native dtype)
    # w_ref:   (H, H)  dense weight, pre-transposed to (in, out), native dtype
    # p_ref:   (3, H)  f32 packed params: [dense bias; LN gamma; LN beta]
    # o_ref:   (TM, H) output tile

    # Dense layer: native-dtype operands on the MXU, f32 accumulator.
    h = jnp.dot(x_ref[...], w_ref[...], preferred_element_type=jnp.float32)

    bias = p_ref[0:1, :]    # (1, H) f32
    gamma = p_ref[1:2, :]   # (1, H) f32
    beta = p_ref[2:3, :]    # (1, H) f32

    # TODO(synk): dropout is identity here (inference); training-mode dropout
    # would use pltpu.prng_seed / pltpu.prng_random_bits.
    h = h + bias + res_ref[...].astype(jnp.float32)

    # Single-pass LayerNorm statistics over the hidden (lane) axis:
    #   var = E[h^2] - mean^2, clamped at 0 against f32 cancellation so rsqrt
    #   never sees a (tiny) negative argument.
    mean = jnp.mean(h, axis=-1, keepdims=True)
    mean_sq = jnp.mean(h * h, axis=-1, keepdims=True)
    var = jnp.maximum(mean_sq - mean * mean, 0.0)
    y = (h - mean) * jax.lax.rsqrt(var + 1e-12)

    o_ref[...] = (gamma * y + beta).astype(o_ref.dtype)


def prepare_bert_self_output_params(dense_w, dense_b, ln_w, ln_b,
                                    *, weight_dtype=None):
    """One-time (per model) parameter prep: transpose the nn.Linear weight from
    PyTorch (out, in) layout to (in, out) for a row-major MXU matmul and pack
    bias / LN gamma / LN beta into a single (3, H) f32 array."""
    wt = jnp.asarray(dense_w).T
    if weight_dtype is not None:
        wt = wt.astype(weight_dtype)
    params = jnp.stack([
        jnp.asarray(dense_b, dtype=jnp.float32),
        jnp.asarray(ln_w, dtype=jnp.float32),
        jnp.asarray(ln_b, dtype=jnp.float32),
    ], axis=0)
    return wt, params


def _vmem_capacity_bytes():
    try:
        return int(pltpu.get_tpu_info().vmem_capacity_bytes)
    except Exception:
        return 128 << 20  # assume a 128 MiB (v5e/v6e-class) part if unknown


def _vmem_usage_bytes(row_tile, H, act_isz, w_isz, out_isz):
    w_bytes = H * H * w_isz                                  # weight, single-buffered
    p_bytes = _round_up(3, 8) * _round_up(H, 128) * 4        # packed params (tiled layout)
    stream = 2 * row_tile * H * (2 * act_isz + out_isz)      # x + res + out, double-buffered
    f32_work = 3 * row_tile * H * 4                          # h + LN temps + pre-cast output
    return w_bytes + p_bytes + stream + f32_work


def _choose_tiling(rows, H, act_isz, w_isz, out_isz):
    cap = _vmem_capacity_bytes()
    if cap <= (64 << 20):                 # v7x: 64 MiB physical per TensorCore
        budget = 48 << 20
        max_tile = 1024
    else:                                 # v5e / v6e: 128 MiB physical
        budget = 100 << 20
        max_tile = 2048 if H <= 768 else 1024

    row_tile = 128
    for cand in (2048, 1024, 512, 256, 128):
        if cand <= max_tile and _vmem_usage_bytes(cand, H, act_isz, w_isz, out_isz) <= budget:
            row_tile = cand
            break

    # Keep >= ~8 grid steps when the problem is big enough so the 'parallel'
    # grid axis balances across v7x's two TensorCores.
    while row_tile > 128 and pl.cdiv(rows, row_tile) < 8:
        row_tile //= 2

    # Clamp for tiny problems; keep a multiple of 16 so bf16 tiles stay
    # sublane-aligned.
    row_tile = max(16, min(row_tile, _round_up(rows, 16)))
    row_tile = _round_up(row_tile, 16)

    vmem_limit = max(_vmem_usage_bytes(row_tile, H, act_isz, w_isz, out_isz) + (4 << 20),
                     32 << 20)
    vmem_limit = int(min(vmem_limit, budget, cap - (8 << 20)))
    return row_tile, vmem_limit


def bert_self_output(hidden_states, input_tensor, dense_w_t, params,
                     *, row_tile=None):
    """hidden_states, input_tensor: (B, S, H).
    dense_w_t: (H_in, H_out) -- already transposed (see prepare_...).
    params: (3, H) f32 packed [dense bias; LN gamma; LN beta]."""
    B, S, H = hidden_states.shape
    rows = B * S

    act_isz = jnp.dtype(hidden_states.dtype).itemsize
    w_isz = jnp.dtype(dense_w_t.dtype).itemsize
    out_isz = act_isz

    auto_tile, vmem_limit = _choose_tiling(rows, H, act_isz, w_isz, out_isz)
    if row_tile is None:
        row_tile = auto_tile
    else:
        row_tile = _round_up(max(16, min(row_tile, _round_up(rows, 16))), 16)

    x2 = hidden_states.reshape(rows, H)
    r2 = input_tensor.reshape(rows, H)

    steps = pl.cdiv(rows, row_tile)
    grid = (steps,)

    cost = pl.CostEstimate(
        flops=2 * steps * row_tile * H * H,
        transcendentals=0,
        bytes_accessed=(H * H * w_isz                       # weight
                        + 2 * rows * H * act_isz            # x + residual
                        + rows * H * out_isz                # output
                        + 3 * H * 4),                       # packed params
    )

    def call(single_buffer_consts):
        # TODO(synk): if per-step DMA is still exposed on v6e traces, bump the
        # x/residual specs to pipeline_mode=pl.Buffered(3).
        const_mode = {"pipeline_mode": pl.Buffered(1)} if single_buffer_consts else {}
        return pl.pallas_call(
            _bert_self_output_kernel,
            out_shape=jax.ShapeDtypeStruct((rows, H), hidden_states.dtype),
            grid_spec=pltpu.PrefetchScalarGridSpec(
                num_scalar_prefetch=0,
                grid=grid,
                in_specs=[
                    pl.BlockSpec((row_tile, H), lambda i: (i, 0)),           # x (streamed)
                    pl.BlockSpec((row_tile, H), lambda i: (i, 0)),           # residual
                    pl.BlockSpec((H, H), lambda i: (0, 0), **const_mode),    # weight (resident)
                    pl.BlockSpec((3, H), lambda i: (0, 0), **const_mode),    # packed params
                ],
                out_specs=pl.BlockSpec((row_tile, H), lambda i: (i, 0)),
            ),
            compiler_params=pltpu.CompilerParams(
                dimension_semantics=("parallel",),
                vmem_limit_bytes=vmem_limit),
            cost_estimate=cost,
        )(x2, r2, dense_w_t, params)

    try:
        out = call(True)
    except Exception:
        # Fallback: default double-buffering of the constant operands
        # (functionally identical, just costs some VMEM headroom).
        out = call(False)

    return out.reshape(B, S, H)


def _reference(hidden_states, input_tensor, dense_w, dense_b, ln_w, ln_b):
    h = jnp.einsum("bsh,oh->bso", hidden_states.astype(jnp.float32),
                   dense_w.astype(jnp.float32)) + dense_b
    h = h + input_tensor.astype(jnp.float32)
    u = jnp.mean(h, axis=-1, keepdims=True)
    s = jnp.mean((h - u) ** 2, axis=-1, keepdims=True)
    y = (h - u) / jnp.sqrt(s + 1e-12)
    return ln_w * y + ln_b


if __name__ == "__main__":
    B, S, H = 2, 8, 32
    key = jax.random.PRNGKey(0)
    k1, k2, k3, k4 = jax.random.split(key, 4)

    hidden_states = jax.random.normal(k1, (B, S, H), dtype=jnp.float32)
    input_tensor = jax.random.normal(k2, (B, S, H), dtype=jnp.float32)

    # nn.Linear(H, H): weight (out, in), bias (out,)
    dense_w = jax.random.normal(k3, (H, H), dtype=jnp.float32) * 0.02
    dense_b = jax.random.normal(k4, (H,), dtype=jnp.float32) * 0.02
    # BertLayerNorm: weight ones, bias zeros
    ln_w = jnp.ones((H,), dtype=jnp.float32)
    ln_b = jnp.zeros((H,), dtype=jnp.float32)

    # --- f32 path ---
    wt_f32, params = prepare_bert_self_output_params(dense_w, dense_b, ln_w, ln_b)
    out = bert_self_output(hidden_states, input_tensor, wt_f32, params)
    out = jax.block_until_ready(out)

    ref = _reference(hidden_states, input_tensor, dense_w, dense_b, ln_w, ln_b)
    assert out.shape == (B, S, H)
    assert jnp.allclose(out, ref, atol=1e-5, rtol=1e-5), "f32 mismatch vs reference"

    # --- bf16 activations / weights, f32 MXU accumulator inside the kernel ---
    # (this is the intended production path, especially on v5e)
    hs_bf16 = hidden_states.astype(jnp.bfloat16)
    it_bf16 = input_tensor.astype(jnp.bfloat16)
    wt_bf16, params_bf = prepare_bert_self_output_params(
        dense_w, dense_b, ln_w, ln_b, weight_dtype=jnp.bfloat16)
    out_bf = bert_self_output(hs_bf16, it_bf16, wt_bf16, params_bf)
    out_bf = jax.block_until_ready(out_bf)

    # Reference on the same bf16-rounded operands (upcast to f32), isolating
    # kernel error (accumulation order, bf16 output cast).
    ref_bf = _reference(hs_bf16.astype(jnp.float32), it_bf16.astype(jnp.float32),
                        wt_bf16.T.astype(jnp.float32), dense_b, ln_w, ln_b)
    assert jnp.allclose(out_bf.astype(jnp.float32), ref_bf, atol=1e-2, rtol=1e-2), \
        "bf16 mismatch vs reference"

    print("KERNEL_OK")
</pallas_src>

<mosaic_0001>
module attributes {stable_mosaic.version = 11 : i64} {
  func.func @_bert_self_output_kernel(%arg0: i32, %arg1: memref<16x32xf32, #tpu.memory_space<vmem>>, %arg2: memref<16x32xf32, #tpu.memory_space<vmem>>, %arg3: memref<32x32xf32, #tpu.memory_space<vmem>>, %arg4: memref<3x32xf32, #tpu.memory_space<vmem>>, %arg5: memref<16x32xf32, #tpu.memory_space<vmem>>) attributes {dimension_semantics = [#tpu.dimension_semantics<parallel>], iteration_bounds = array<i64: 1>, scalar_prefetch = 0 : i64, scratch_operands = 0 : i64, tpu.core_type = #tpu.core_type<tc>, window_params = [{transform_indices = @transform_0, window_bounds = array<i64: 16, 32>}, {transform_indices = @transform_1, window_bounds = array<i64: 16, 32>}, {pipeline_mode = #tpu.pipeline_mode<synchronous>, transform_indices = @transform_2, window_bounds = array<i64: 32, 32>}, {pipeline_mode = #tpu.pipeline_mode<synchronous>, transform_indices = @transform_3, window_bounds = array<i64: 3, 32>}, {transform_indices = @transform_4, window_bounds = array<i64: 16, 32>}]} {
    %c0 = arith.constant 0 : index
    %c0_0 = arith.constant 0 : index
    %0 = vector.load %arg1[%c0, %c0_0] : memref<16x32xf32, #tpu.memory_space<vmem>>, vector<16x32xf32>
    %c0_1 = arith.constant 0 : index
    %c0_2 = arith.constant 0 : index
    %1 = vector.load %arg3[%c0_1, %c0_2] : memref<32x32xf32, #tpu.memory_space<vmem>>, vector<32x32xf32>
    %cst = arith.constant dense<0.000000e+00> : vector<16x32xf32>
    %2 = tpu.matmul %0, %1, %cst {dimension_numbers = #tpu.dot_dimension_numbers<[1], [0], [0], [1], [0, 0, 1, 1], [], []>} : vector<16x32xf32>, vector<32x32xf32>, vector<16x32xf32> -> vector<16x32xf32>
    %c0_3 = arith.constant 0 : index
    %c0_4 = arith.constant 0 : index
    %3 = vector.load %arg4[%c0_3, %c0_4] : memref<3x32xf32, #tpu.memory_space<vmem>>, vector<1x32xf32>
    %c1 = arith.constant 1 : index
    %c0_5 = arith.constant 0 : index
    %4 = vector.load %arg4[%c1, %c0_5] : memref<3x32xf32, #tpu.memory_space<vmem>>, vector<1x32xf32>
    %c2 = arith.constant 2 : index
    %c0_6 = arith.constant 0 : index
    %5 = vector.load %arg4[%c2, %c0_6] : memref<3x32xf32, #tpu.memory_space<vmem>>, vector<1x32xf32>
    %6 = vector.broadcast %3 : vector<1x32xf32> to vector<16x32xf32>
    %7 = arith.addf %2, %6 : vector<16x32xf32>
    %c0_7 = arith.constant 0 : index
    %c0_8 = arith.constant 0 : index
    %8 = vector.load %arg2[%c0_7, %c0_8] : memref<16x32xf32, #tpu.memory_space<vmem>>, vector<16x32xf32>
    %9 = arith.addf %7, %8 : vector<16x32xf32>
    %cst_9 = arith.constant dense<0.000000e+00> : vector<16xf32>
    %10 = vector.multi_reduction <add>, %9, %cst_9 [1] : vector<16x32xf32> to vector<16xf32>
    %11 = vector.shape_cast %10 : vector<16xf32> to vector<16x1xf32>
    %cst_10 = arith.constant 3.200000e+01 : f32
    %12 = vector.broadcast %cst_10 : f32 to vector<16x1xf32>
    %13 = arith.divf %11, %12 : vector<16x1xf32>
    %14 = arith.mulf %9, %9 : vector<16x32xf32>
    %cst_11 = arith.constant dense<0.000000e+00> : vector<16xf32>
    %15 = vector.multi_reduction <add>, %14, %cst_11 [1] : vector<16x32xf32> to vector<16xf32>
    %16 = vector.shape_cast %15 : vector<16xf32> to vector<16x1xf32>
    %cst_12 = arith.constant 3.200000e+01 : f32
    %17 = vector.broadcast %cst_12 : f32 to vector<16x1xf32>
    %18 = arith.divf %16, %17 : vector<16x1xf32>
    %19 = arith.mulf %13, %13 : vector<16x1xf32>
    %20 = arith.subf %18, %19 : vector<16x1xf32>
    %cst_13 = arith.constant 0.000000e+00 : f32
    %21 = vector.broadcast %cst_13 : f32 to vector<16x1xf32>
    %22 = arith.maximumf %20, %21 : vector<16x1xf32>
    %23 = vector.broadcast %13 : vector<16x1xf32> to vector<16x32xf32>
    %24 = arith.subf %9, %23 : vector<16x32xf32>
    %cst_14 = arith.constant 9.99999996E-13 : f32
    %25 = vector.broadcast %cst_14 : f32 to vector<16x1xf32>
    %26 = arith.addf %22, %25 : vector<16x1xf32>
    %27 = math.rsqrt %26 : vector<16x1xf32>
    %28 = vector.broadcast %27 : vector<16x1xf32> to vector<16x32xf32>
    %29 = arith.mulf %24, %28 : vector<16x32xf32>
    %30 = vector.broadcast %4 : vector<1x32xf32> to vector<16x32xf32>
    %31 = arith.mulf %30, %29 : vector<16x32xf32>
    %32 = vector.broadcast %5 : vector<1x32xf32> to vector<16x32xf32>
    %33 = arith.addf %31, %32 : vector<16x32xf32>
    %c0_15 = arith.constant 0 : index
    %c0_16 = arith.constant 0 : index
    %34 = vector.load %arg5[%c0_15, %c0_16] : memref<16x32xf32, #tpu.memory_space<vmem>>, vector<16x32xf32>
    tpu.vector_store %arg5[%c0_15, %c0_16], %33 {strides = array<i32>} : memref<16x32xf32, #tpu.memory_space<vmem>>, vector<16x32xf32>,
    return
  }
  func.func @transform_0(%arg0: i32) -> (i32, i32) {
    %c0_i32 = arith.constant 0 : i32
    %c0_i32_0 = arith.constant 0 : i32
    return %arg0, %c0_i32 : i32, i32
  }
  func.func @transform_1(%arg0: i32) -> (i32, i32) {
    %c0_i32 = arith.constant 0 : i32
    %c0_i32_0 = arith.constant 0 : i32
    return %arg0, %c0_i32 : i32, i32
  }
  func.func @transform_2(%arg0: i32) -> (i32, i32) {
    %c0_i32 = arith.constant 0 : i32
    %c0_i32_0 = arith.constant 0 : i32
    %c0_i32_1 = arith.constant 0 : i32
    return %c0_i32, %c0_i32_0 : i32, i32
  }
  func.func @transform_3(%arg0: i32) -> (i32, i32) {
    %c0_i32 = arith.constant 0 : i32
    %c0_i32_0 = arith.constant 0 : i32
    %c0_i32_1 = arith.constant 0 : i32
    return %c0_i32, %c0_i32_0 : i32, i32
  }
  func.func @transform_4(%arg0: i32) -> (i32, i32) {
    %c0_i32 = arith.constant 0 : i32
    %c0_i32_0 = arith.constant 0 : i32
    return %arg0, %c0_i32 : i32, i32
  }
}

module attributes {stable_mosaic.version = 11 : i64} {
  func.func @_bert_self_output_kernel(%arg0: i32, %arg1: memref<16x32xf32, #tpu.memory_space<vmem>>, %arg2: memref<16x32xf32, #tpu.memory_space<vmem>>, %arg3: memref<32x32xf32, #tpu.memory_space<vmem>>, %arg4: memref<3x32xf32, #tpu.memory_space<vmem>>, %arg5: memref<16x32xf32, #tpu.memory_space<vmem>>) attributes {dimension_semantics = [#tpu.dimension_semantics<parallel>], iteration_bounds = array<i64: 1>, scalar_prefetch = 0 : i64, scratch_operands = 0 : i64, tpu.core_type = #tpu.core_type<tc>, window_params = [{transform_indices = @transform_0, window_bounds = array<i64: 16, 32>}, {transform_indices = @transform_1, window_bounds = array<i64: 16, 32>}, {pipeline_mode = #tpu.pipeline_mode<synchronous>, transform_indices = @transform_2, window_bounds = array<i64: 32, 32>}, {pipeline_mode = #tpu.pipeline_mode<synchronous>, transform_indices = @transform_3, window_bounds = array<i64: 3, 32>}, {transform_indices = @transform_4, window_bounds = array<i64: 16, 32>}]} {
    %c0 = arith.constant 0 : index
    %c0_0 = arith.constant 0 : index
    %0 = vector.load %arg1[%c0, %c0_0] : memref<16x32xf32, #tpu.memory_space<vmem>>, vector<16x32xf32>
    %c0_1 = arith.constant 0 : index
    %c0_2 = arith.constant 0 : index
    %1 = vector.load %arg3[%c0_1, %c0_2] : memref<32x32xf32, #tpu.memory_space<vmem>>, vector<32x32xf32>
    %cst = arith.constant dense<0.000000e+00> : vector<16x32xf32>
    %2 = tpu.matmul %0, %1, %cst {dimension_numbers = #tpu.dot_dimension_numbers<[1], [0], [0], [1], [0, 0, 1, 1], [], []>} : vector<16x32xf32>, vector<32x32xf32>, vector<16x32xf32> -> vector<16x32xf32>
    %c0_3 = arith.constant 0 : index
    %c0_4 = arith.constant 0 : index
    %3 = vector.load %arg4[%c0_3, %c0_4] : memref<3x32xf32, #tpu.memory_space<vmem>>, vector<1x32xf32>
    %c1 = arith.constant 1 : index
    %c0_5 = arith.constant 0 : index
    %4 = vector.load %arg4[%c1, %c0_5] : memref<3x32xf32, #tpu.memory_space<vmem>>, vector<1x32xf32>
    %c2 = arith.constant 2 : index
    %c0_6 = arith.constant 0 : index
    %5 = vector.load %arg4[%c2, %c0_6] : memref<3x32xf32, #tpu.memory_space<vmem>>, vector<1x32xf32>
    %6 = vector.broadcast %3 : vector<1x32xf32> to vector<16x32xf32>
    %7 = arith.addf %2, %6 : vector<16x32xf32>
    %c0_7 = arith.constant 0 : index
    %c0_8 = arith.constant 0 : index
    %8 = vector.load %arg2[%c0_7, %c0_8] : memref<16x32xf32, #tpu.memory_space<vmem>>, vector<16x32xf32>
    %9 = arith.addf %7, %8 : vector<16x32xf32>
    %cst_9 = arith.constant dense<0.000000e+00> : vector<16xf32>
    %10 = vector.multi_reduction <add>, %9, %cst_9 [1] : vector<16x32xf32> to vector<16xf32>
    %11 = vector.shape_cast %10 : vector<16xf32> to vector<16x1xf32>
    %cst_10 = arith.constant 3.200000e+01 : f32
    %12 = vector.broadcast %cst_10 : f32 to vector<16x1xf32>
    %13 = arith.divf %11, %12 : vector<16x1xf32>
    %14 = arith.mulf %9, %9 : vector<16x32xf32>
    %cst_11 = arith.constant dense<0.000000e+00> : vector<16xf32>
    %15 = vector.multi_reduction <add>, %14, %cst_11 [1] : vector<16x32xf32> to vector<16xf32>
    %16 = vector.shape_cast %15 : vector<16xf32> to vector<16x1xf32>
    %cst_12 = arith.constant 3.200000e+01 : f32
    %17 = vector.broadcast %cst_12 : f32 to vector<16x1xf32>
    %18 = arith.divf %16, %17 : vector<16x1xf32>
    %19 = arith.mulf %13, %13 : vector<16x1xf32>
    %20 = arith.subf %18, %19 : vector<16x1xf32>
    %cst_13 = arith.constant 0.000000e+00 : f32
    %21 = vector.broadcast %cst_13 : f32 to vector<16x1xf32>
    %22 = arith.maximumf %20, %21 : vector<16x1xf32>
    %23 = vector.broadcast %13 : vector<16x1xf32> to vector<16x32xf32>
    %24 = arith.subf %9, %23 : vector<16x32xf32>
    %cst_14 = arith.constant 9.99999996E-13 : f32
    %25 = vector.broadcast %cst_14 : f32 to vector<16x1xf32>
    %26 = arith.addf %22, %25 : vector<16x1xf32>
    %27 = math.rsqrt %26 : vector<16x1xf32>
    %28 = vector.broadcast %27 : vector<16x1xf32> to vector<16x32xf32>
    %29 = arith.mulf %24, %28 : vector<16x32xf32>
    %30 = vector.broadcast %4 : vector<1x32xf32> to vector<16x32xf32>
    %31 = arith.mulf %30, %29 : vector<16x32xf32>
    %32 = vector.broadcast %5 : vector<1x32xf32> to vector<16x32xf32>
    %33 = arith.addf %31, %32 : vector<16x32xf32>
    %c0_15 = arith.constant 0 : index
    %c0_16 = arith.constant 0 : index
    %34 = vector.load %arg5[%c0_15, %c0_16] : memref<16x32xf32, #tpu.memory_space<vmem>>, vector<16x32xf32>
    tpu.vector_store %arg5[%c0_15, %c0_16], %33 {strides = array<i32>} : memref<16x32xf32, #tpu.memory_space<vmem>>, vector<16x32xf32>,
    return
  }
  func.func @transform_0(%arg0: i32) -> (i32, i32) {
    %c0_i32 = arith.constant 0 : i32
    %c0_i32_0 = arith.constant 0 : i32
    return %arg0, %c0_i32 : i32, i32
  }
  func.func @transform_1(%arg0: i32) -> (i32, i32) {
    %c0_i32 = arith.constant 0 : i32
    %c0_i32_0 = arith.constant 0 : i32
    return %arg0, %c0_i32 : i32, i32
  }
  func.func @transform_2(%arg0: i32) -> (i32, i32) {
    %c0_i32 = arith.constant 0 : i32
    %c0_i32_0 = arith.constant 0 : i32
    %c0_i32_1 = arith.constant 0 : i32
    return %c0_i32, %c0_i32_0 : i32, i32
  }
  func.func @transform_3(%arg0: i32) -> (i32, i32) {
    %c0_i32 = arith.constant 0 : i32
    %c0_i32_0 = arith.constant 0 : i32
    %c0_i32_1 = arith.constant 0 : i32
    return %c0_i32, %c0_i32_0 : i32, i32
  }
  func.func @transform_4(%arg0: i32) -> (i32, i32) {
    %c0_i32 = arith.constant 0 : i32
    %c0_i32_0 = arith.constant 0 : i32
    return %arg0, %c0_i32 : i32, i32
  }
}

</mosaic_0001>

<llo_original>
// kernel: tpu_custom_call.1
$region0: #{tpu_custom_call.1}
  #allocation0 [shape = 'u32[]', space=smem, size = 0x4, offset = 0x4, fixed_abs, tag = 'smem constant byte address 0x4 - core index']
  #allocation1 [shape = 'u32[144,128]{1,0:T(1,128)}', space=vmem, size = 0x12000, scoped, tag = 'internal scratch']
  %s0 = inlined_call_operand.hbm [shape: f32[16,32], index: 0, kind: input, shape index: {}]
  %s1 = inlined_call_operand.hbm [shape: f32[16,32], index: 1, kind: input, shape index: {}]
  %s2 = inlined_call_operand.hbm [shape: f32[32,32], index: 2, kind: input, shape index: {}]
  %s3 = inlined_call_operand.vmem [shape: f32[3,32], index: 3, kind: input, shape index: {}]
  %s4 = inlined_call_operand.hbm [shape: f32[16,32], index: 4, kind: output, shape index: {}]
  %s5 = sld [smem:[#allocation0]]
  $region38: #{tpu_custom_call.1} parent=0
    _
  %s7 = ssub.s32 1, %s5
  %s8 = scalar_select 0, %s7, %s5
  $region1: #{tpu_custom_call.1} parent=0
    #allocation2 [shape = 'u8[8192]{0}', space=vmem, size = 0x2000, scoped, tag = 'input window, operand 0, single buffered']
    #allocation3 [shape = 's32[1]{0}', space=sflag, size = 0x4, scoped, tag = 'scoped memory for tpu_custom_call.1']
    #allocation4 [shape = 's32[1]{0}', space=sflag, size = 0x4, scoped, tag = 'scoped memory for tpu_custom_call.1']
    #allocation5 [shape = 'u8[8192]{0}', space=vmem, size = 0x2000, scoped, tag = 'input window, operand 1, single buffered']
    #allocation6 [shape = 's32[1]{0}', space=sflag, size = 0x4, scoped, tag = 'scoped memory for tpu_custom_call.1']
    #allocation7 [shape = 'u8[16384]{0}', space=vmem, size = 0x4000, scoped, tag = 'input window, operand 2, single buffered']
    #allocation8 [shape = 'u8[8192]{0}', space=vmem, size = 0x2000, scoped, tag = 'output window, operand 0, single buffered']
    %9 = vsyncpa [#allocation3], 0
    %10 = vsyncpa [#allocation6], 0
    %11 = vsyncpa [#allocation4], 0
    // Predicated region
    $region2: #{tpu_custom_call.1} parent=1 // pred_check
      _
    $region3: #{tpu_custom_call.1} parent=1 // pred_check_branch
      %13 = sbr.rel (0) target = $region5
    $region4: #{tpu_custom_call.1} parent=1 // pred_region
      %s15 = ssub.s32 256, 256
      %16 = vsyncadd [#allocation3], %s15
      %s17 = sshll.u32 [#allocation2], 4
      %s18 = int_to_ptr.vmem [resolvable:$true] %s17
      %23 = dma.hbm_to_vmem [thread:$0]  %s0, 256, %s18, [#allocation3], 128, 128, 8
    $region5: #{tpu_custom_call.1} parent=1 // pred_fallthru
      _
    // Predicated region
    $region6: #{tpu_custom_call.1} parent=1 // pred_check
      _
    $region7: #{tpu_custom_call.1} parent=1 // pred_check_branch
      %25 = sbr.rel (0) target = $region9
    $region8: #{tpu_custom_call.1} parent=1 // pred_region
      %s27 = ssub.s32 256, 256
      %28 = vsyncadd [#allocation6], %s27
      %s29 = sshll.u32 [#allocation5], 4
      %s30 = int_to_ptr.vmem [resolvable:$true] %s29
      %35 = dma.hbm_to_vmem [thread:$0]  %s1, 256, %s30, [#allocation6], 128, 128, 8
    $region9: #{tpu_custom_call.1} parent=1 // pred_fallthru
      _
    // Predicated region
    $region10: #{tpu_custom_call.1} parent=1 // pred_check
      _
    $region11: #{tpu_custom_call.1} parent=1 // pred_check_branch
      %37 = sbr.rel (0) target = $region13
    $region12: #{tpu_custom_call.1} parent=1 // pred_region
      %s39 = ssub.s32 512, 512
      %40 = vsyncadd [#allocation6], %s39
      %s41 = sshll.u32 [#allocation7], 4
      %s42 = int_to_ptr.vmem [resolvable:$true] %s41
      %47 = dma.hbm_to_vmem [thread:$0]  %s2, 512, %s42, [#allocation6], 128, 128, 8
    $region13: #{tpu_custom_call.1} parent=1 // pred_fallthru
      _
    // Predicated region
    $region14: #{tpu_custom_call.1} parent=1 // pred_check
      _
    $region15: #{tpu_custom_call.1} parent=1 // pred_check_branch
      %49 = sbr.rel (0) target = $region17
    $region16: #{tpu_custom_call.1} parent=1 // pred_region
      _
    $region17: #{tpu_custom_call.1} parent=1 // pred_fallthru
      _
    // Predicated region
    $region18: #{tpu_custom_call.1} parent=1 // pred_check
      _
    $region19: #{tpu_custom_call.1} parent=1 // pred_check_branch
      %51 = sbr.rel (0) target = $region21
    $region20: #{tpu_custom_call.1} parent=1 // pred_region
      %52 = dma.done [#allocation3], 256
    $region21: #{tpu_custom_call.1} parent=1 // pred_fallthru
      _
    // Predicated region
    $region22: #{tpu_custom_call.1} parent=1 // pred_check
      _
    $region23: #{tpu_custom_call.1} parent=1 // pred_check_branch
      %54 = sbr.rel (0) target = $region25
    $region24: #{tpu_custom_call.1} parent=1 // pred_region
      %55 = dma.done [#allocation6], 256
    $region25: #{tpu_custom_call.1} parent=1 // pred_fallthru
      _
    // Predicated region
    $region26: #{tpu_custom_call.1} parent=1 // pred_check
      _
    $region27: #{tpu_custom_call.1} parent=1 // pred_check_branch
      %57 = sbr.rel (0) target = $region29
    $region28: #{tpu_custom_call.1} parent=1 // pred_region
      %58 = dma.done [#allocation6], 512
    $region29: #{tpu_custom_call.1} parent=1 // pred_fallthru
      _
    %v59 = vld [vmem:[#allocation2] sm:$0xff]
    %v60 = vld [vmem:[#allocation2 + $0x8] sm:$0xff]
    %v61 = vld [vmem:[#allocation7] sm:$0xff]
    %v62 = vld [vmem:[#allocation7 + $0x8] sm:$0xff]
    %v63 = vld [vmem:[#allocation7 + $0x10] sm:$0xff]
    %v64 = vld [vmem:[#allocation7 + $0x18] sm:$0xff]
    %v65 = vld [vmem:[%s3] sm:$0x1]
    %v66 = vld [vmem:[%s3 + $0x1] sm:$0x1]
    %v67 = vld [vmem:[%s3 + $0x2] sm:$0x1]
    %v68 = vlaneseq
    %v69 = vshrl.u32 %v68, 7
    %v70 = vsub.s32 0, %v69
    %v71 = vrot.slane %v65, %v70
    %vm72 = vcmask 261120
    %v74 = vsel %vm72, %v59, 0
    %v77 = vsel %vm72, %v60, 0
    %79 = vmatprep.subr.mxu0 0.0
    %80 = vmatpush1.msra.mxu0 %v61
    %81 = vmatprep.subr.mxu0 0.0
    %82 = vmatpush1.msra.mxu0 %v62
    %83 = vmatprep.subr.mxu0 0.0
    %84 = vmatpush1.msra.mxu0 %v63
    %85 = vmatprep.subr.mxu0 0.0
    %86 = vmatpush1.msra.mxu0 %v64
    %87 = vmatprep.subr.mxu0 0.0
    %88 = vmatpush1.msra.mxu0 0.0
    %89 = vmatprep.subr.mxu0 0.0
    %90 = vmatpush1.msra.mxu0 0.0
    %91 = vmatprep.subr.mxu0 0.0
    %92 = vmatpush1.msra.mxu0 0.0
    %93 = vmatprep.subr.mxu0 0.0
    %94 = vmatpush1.msra.mxu0 0.0
    %95 = vmatprep.subr.mxu0 0.0
    %96 = vmatpush1.msra.mxu0 0.0
    %97 = vmatprep.subr.mxu0 0.0
    %98 = vmatpush1.msra.mxu0 0.0
    %99 = vmatprep.subr.mxu0 0.0
    %100 = vmatpush1.msra.mxu0 0.0
    %101 = vmatprep.subr.mxu0 0.0
    %102 = vmatpush1.msra.mxu0 0.0
    %103 = vmatprep.subr.mxu0 0.0
    %104 = vmatpush1.msra.mxu0 0.0
    %105 = vmatprep.subr.mxu0 0.0
    %106 = vmatpush1.msra.mxu0 0.0
    %107 = vmatprep.subr.mxu0 0.0
    %108 = vmatpush1.msra.mxu0 0.0
    %109 = vmatprep.subr.mxu0 0.0
    %110 = vmatpush1.msra.mxu0 0.0
    %111 = vmatprep.subr.mxu0 0.0
    %112 = vmatpush1.msra.mxu0 0.0
    %113 = vmatprep.subr.mxu0 0.0
    %114 = vmatpush1.msra.mxu0 0.0
    %115 = vmatprep.subr.mxu0 0.0
    %116 = vmatpush1.msra.mxu0 0.0
    %117 = vmatprep.subr.mxu0 0.0
    %118 = vmatpush1.msra.mxu0 0.0
    %119 = vmatprep.subr.mxu0 0.0
    %120 = vmatpush1.msra.mxu0 0.0
    %121 = vmatprep.subr.mxu0 0.0
    %122 = vmatpush1.msra.mxu0 0.0
    %123 = vmatprep.subr.mxu0 0.0
    %124 = vmatpush1.msra.mxu0 0.0
    %125 = vmatprep.subr.mxu0 0.0
    %126 = vmatpush1.msra.mxu0 0.0
    %127 = vmatprep.subr.mxu0 0.0
    %128 = vmatpush1.msra.mxu0 0.0
    %129 = vmatprep.subr.mxu0 0.0
    %130 = vmatpush1.msra.mxu0 0.0
    %131 = vmatprep.subr.mxu0 0.0
    %132 = vmatpush1.msra.mxu0 0.0
    %133 = vmatprep.subr.mxu0 0.0
    %134 = vmatpush1.msra.mxu0 0.0
    %135 = vmatprep.subr.mxu0 0.0
    %136 = vmatpush1.msra.mxu0 0.0
    %137 = vmatprep.subr.mxu0 0.0
    %138 = vmatpush1.msra.mxu0 0.0
    %139 = vmatprep.subr.mxu0 0.0
    %140 = vmatpush1.msra.mxu0 0.0
    %141 = vmatprep.subr.mxu0 0.0
    %142 = vmatpush1.msra.mxu0 0.0
    %143 = vmatprep.mubr.f32.mxu0 0.0
    %144 = vmatmul.mubr.f32.gmra.mrb[0].mxu0 %v74
    %v145 = vpop.f32.mrb[0].mxu0
    %v146 = vadd.f32 %v71, %v145
    %v147 = vpop.f32.mrb[0].mxu0
    %148 = vmatprep.mubr.f32.mxu0 0.0
    %149 = vmatmul.mubr.f32.gmra.mrb[0].mxu0 %v77
    %v150 = vpop.f32.mrb[0].mxu0
    %v151 = vadd.f32 %v71, %v150
    %v152 = vpop.f32.mrb[0].mxu0
    %153 = vdwg.mxu0
    %v154 = vld [vmem:[#allocation5] sm:$0xff]
    %v155 = vld [vmem:[#allocation5 + $0x8] sm:$0xff]
    %v156 = vadd.f32 %v146, %v154
    %v157 = vadd.f32 %v151, %v155
    %v158 = vsel %vm72, %v156, 0.0
    %159 = vadd.xlane.f32.xlu0 %v158
    %v160 = vpop.xlane.xlu0 %159
    %v161 = vsel %vm72, %v157, 0.0
    %162 = vadd.xlane.f32.xlu0 %v161
    %v163 = vpop.xlane.xlu0 %162
    %v164 = vrcp.pop 32.0
    %v165 = vmul.f32 %v160, %v164
    %v166 = vmul.f32 %v163, %v164
    %v167 = vmul.f32 %v156, %v156
    %v168 = vmul.f32 %v157, %v157
    %v169 = vsel %vm72, %v167, 0.0
    %170 = vadd.xlane.f32.xlu0 %v169
    %v171 = vpop.xlane.xlu0 %170
    %v172 = vsel %vm72, %v168, 0.0
    %173 = vadd.xlane.f32.xlu0 %v172
    %v174 = vpop.xlane.xlu0 %173
    %v175 = vmul.f32 %v171, %v164
    %v176 = vmul.f32 %v174, %v164
    %v177 = vmul.f32 %v165, %v165
    %v178 = vmul.f32 %v166, %v166
    %v179 = vsub.f32 %v175, %v177
    %v180 = vsub.f32 %v176, %v178
    %v181 = vmax.f32 %v179, 0.0
    %v182 = vmax.f32 %v180, 0.0
    %v183 = vsub.f32 %v156, %v165
    %v184 = vsub.f32 %v157, %v166
    %v185 = vadd.f32 %v181, 1e-12
    %v186 = vadd.f32 %v182, 1e-12
    %v187 = vrsqrt.pop %v185
    %v188 = vrsqrt.pop %v186
    %v189 = vmul.f32 %v183, %v187
    %v190 = vmul.f32 %v184, %v188
    %v191 = vlaneseq
    %v192 = vshrl.u32 %v191, 7
    %v193 = vsub.s32 0, %v192
    %v194 = vrot.slane %v66, %v193
    %v195 = vmul.f32 %v194, %v189
    %v196 = vmul.f32 %v194, %v190
    %v197 = vlaneseq
    %v198 = vshrl.u32 %v197, 7
    %v199 = vsub.s32 0, %v198
    %v200 = vrot.slane %v67, %v199
    %v201 = vadd.f32 %v195, %v200
    %v202 = vadd.f32 %v196, %v200
    %203 = vst.msk [vmem:[#allocation8] sm:$0xff] %vm72, %v201
    %204 = vst.msk [vmem:[#allocation8 + $0x8] sm:$0xff] %vm72, %v202
    // Predicated region
    $region30: #{tpu_custom_call.1} parent=1 // pred_check
      _
    $region31: #{tpu_custom_call.1} parent=1 // pred_check_branch
      %206 = sbr.rel (0) target = $region33
    $region32: #{tpu_custom_call.1} parent=1 // pred_region
      %s208 = ssub.s32 256, 256
      %209 = vsyncadd [#allocation4], %s208
      %s210 = sshll.u32 [#allocation8], 4
      %s211 = int_to_ptr.vmem [resolvable:$true] %s210
      %216 = dma.vmem_to_hbm [thread:$0]  %s211, 256, %s4, [#allocation4], 128, 128, 8
    $region33: #{tpu_custom_call.1} parent=1 // pred_fallthru
      _
    // Predicated region
    $region34: #{tpu_custom_call.1} parent=1 // pred_check
      _
    $region35: #{tpu_custom_call.1} parent=1 // pred_check_branch
      %218 = sbr.rel (0) target = $region37
    $region36: #{tpu_custom_call.1} parent=1 // pred_region
      %219 = dma.done [#allocation4], 256
    $region37: #{tpu_custom_call.1} parent=1 // pred_fallthru
      _
    %220 = vsyncpa [#allocation3], 1
    %221 = vsyncpa [#allocation6], 1
    %222 = vsyncpa [#allocation4], 1

// kernel: tpu_custom_call.1
$region0: #{tpu_custom_call.1}
  #allocation0 [shape = 'u32[]', space=smem, size = 0x4, offset = 0x4, fixed_abs, tag = 'smem constant byte address 0x4 - core index']
  #allocation1 [shape = 'u32[144,128]{1,0:T(1,128)}', space=vmem, size = 0x12000, scoped, tag = 'internal scratch']
  %s0 = inlined_call_operand.hbm [shape: f32[16,32], index: 0, kind: input, shape index: {}]
  %s1 = inlined_call_operand.hbm [shape: f32[16,32], index: 1, kind: input, shape index: {}]
  %s2 = inlined_call_operand.hbm [shape: f32[32,32], index: 2, kind: input, shape index: {}]
  %s3 = inlined_call_operand.vmem [shape: f32[3,32], index: 3, kind: input, shape index: {}]
  %s4 = inlined_call_operand.hbm [shape: f32[16,32], index: 4, kind: output, shape index: {}]
  %s5 = sld [smem:[#allocation0]]
  $region38: #{tpu_custom_call.1} parent=0
    _
  %s7 = ssub.s32 1, %s5
  %s8 = scalar_select 0, %s7, %s5
  $region1: #{tpu_custom_call.1} parent=0
    #allocation2 [shape = 'u8[8192]{0}', space=vmem, size = 0x2000, scoped, tag = 'input window, operand 0, single buffered']
    #allocation3 [shape = 's32[1]{0}', space=sflag, size = 0x4, scoped, tag = 'scoped memory for tpu_custom_call.1']
    #allocation4 [shape = 's32[1]{0}', space=sflag, size = 0x4, scoped, tag = 'scoped memory for tpu_custom_call.1']
    #allocation5 [shape = 'u8[8192]{0}', space=vmem, size = 0x2000, scoped, tag = 'input window, operand 1, single buffered']
    #allocation6 [shape = 's32[1]{0}', space=sflag, size = 0x4, scoped, tag = 'scoped memory for tpu_custom_call.1']
    #allocation7 [shape = 'u8[16384]{0}', space=vmem, size = 0x4000, scoped, tag = 'input window, operand 2, single buffered']
    #allocation8 [shape = 'u8[8192]{0}', space=vmem, size = 0x2000, scoped, tag = 'output window, operand 0, single buffered']
    %9 = vsyncpa [#allocation3], 0
    %10 = vsyncpa [#allocation6], 0
    %11 = vsyncpa [#allocation4], 0
    // Predicated region
    $region2: #{tpu_custom_call.1} parent=1 // pred_check
      _
    $region3: #{tpu_custom_call.1} parent=1 // pred_check_branch
      %13 = sbr.rel (0) target = $region5
    $region4: #{tpu_custom_call.1} parent=1 // pred_region
      %s15 = ssub.s32 256, 256
      %16 = vsyncadd [#allocation3], %s15
      %s17 = sshll.u32 [#allocation2], 4
      %s18 = int_to_ptr.vmem [resolvable:$true] %s17
      %23 = dma.hbm_to_vmem [thread:$0]  %s0, 256, %s18, [#allocation3], 128, 128, 8
    $region5: #{tpu_custom_call.1} parent=1 // pred_fallthru
      _
    // Predicated region
    $region6: #{tpu_custom_call.1} parent=1 // pred_check
      _
    $region7: #{tpu_custom_call.1} parent=1 // pred_check_branch
      %25 = sbr.rel (0) target = $region9
    $region8: #{tpu_custom_call.1} parent=1 // pred_region
      %s27 = ssub.s32 256, 256
      %28 = vsyncadd [#allocation6], %s27
      %s29 = sshll.u32 [#allocation5], 4
      %s30 = int_to_ptr.vmem [resolvable:$true] %s29
      %35 = dma.hbm_to_vmem [thread:$0]  %s1, 256, %s30, [#allocation6], 128, 128, 8
    $region9: #{tpu_custom_call.1} parent=1 // pred_fallthru
      _
    // Predicated region
    $region10: #{tpu_custom_call.1} parent=1 // pred_check
      _
    $region11: #{tpu_custom_call.1} parent=1 // pred_check_branch
      %37 = sbr.rel (0) target = $region13
    $region12: #{tpu_custom_call.1} parent=1 // pred_region
      %s39 = ssub.s32 512, 512
      %40 = vsyncadd [#allocation6], %s39
      %s41 = sshll.u32 [#allocation7], 4
      %s42 = int_to_ptr.vmem [resolvable:$true] %s41
      %47 = dma.hbm_to_vmem [thread:$0]  %s2, 512, %s42, [#allocation6], 128, 128, 8
    $region13: #{tpu_custom_call.1} parent=1 // pred_fallthru
      _
    // Predicated region
    $region14: #{tpu_custom_call.1} parent=1 // pred_check
      _
    $region15: #{tpu_custom_call.1} parent=1 // pred_check_branch
      %49 = sbr.rel (0) target = $region17
    $region16: #{tpu_custom_call.1} parent=1 // pred_region
      _
    $region17: #{tpu_custom_call.1} parent=1 // pred_fallthru
      _
    // Predicated region
    $region18: #{tpu_custom_call.1} parent=1 // pred_check
      _
    $region19: #{tpu_custom_call.1} parent=1 // pred_check_branch
      %51 = sbr.rel (0) target = $region21
    $region20: #{tpu_custom_call.1} parent=1 // pred_region
      %52 = dma.done [#allocation3], 256
    $region21: #{tpu_custom_call.1} parent=1 // pred_fallthru
      _
    // Predicated region
    $region22: #{tpu_custom_call.1} parent=1 // pred_check
      _
    $region23: #{tpu_custom_call.1} parent=1 // pred_check_branch
      %54 = sbr.rel (0) target = $region25
    $region24: #{tpu_custom_call.1} parent=1 // pred_region
      %55 = dma.done [#allocation6], 256
    $region25: #{tpu_custom_call.1} parent=1 // pred_fallthru
      _
    // Predicated region
    $region26: #{tpu_custom_call.1} parent=1 // pred_check
      _
    $region27: #{tpu_custom_call.1} parent=1 // pred_check_branch
      %57 = sbr.rel (0) target = $region29
    $region28: #{tpu_custom_call.1} parent=1 // pred_region
      %58 = dma.done [#allocation6], 512
    $region29: #{tpu_custom_call.1} parent=1 // pred_fallthru
      _
    %v59 = vld [vmem:[#allocation2] sm:$0xff]
    %v60 = vld [vmem:[#allocation2 + $0x8] sm:$0xff]
    %v61 = vld [vmem:[#allocation7] sm:$0xff]
    %v62 = vld [vmem:[#allocation7 + $0x8] sm:$0xff]
    %v63 = vld [vmem:[#allocation7 + $0x10] sm:$0xff]
    %v64 = vld [vmem:[#allocation7 + $0x18] sm:$0xff]
    %v65 = vld [vmem:[%s3] sm:$0x1]
    %v66 = vld [vmem:[%s3 + $0x1] sm:$0x1]
    %v67 = vld [vmem:[%s3 + $0x2] sm:$0x1]
    %v68 = vlaneseq
    %v69 = vshrl.u32 %v68, 7
    %v70 = vsub.s32 0, %v69
    %v71 = vrot.slane %v65, %v70
    %vm72 = vcmask 261120
    %v74 = vsel %vm72, %v59, 0
    %v77 = vsel %vm72, %v60, 0
    %79 = vmatprep.subr.mxu0 0.0
    %80 = vmatpush1.msra.mxu0 %v61
    %81 = vmatprep.subr.mxu0 0.0
    %82 = vmatpush1.msra.mxu0 %v62
    %83 = vmatprep.subr.mxu0 0.0
    %84 = vmatpush1.msra.mxu0 %v63
    %85 = vmatprep.subr.mxu0 0.0
    %86 = vmatpush1.msra.mxu0 %v64
    %87 = vmatprep.subr.mxu0 0.0
    %88 = vmatpush1.msra.mxu0 0.0
    %89 = vmatprep.subr.mxu0 0.0
    %90 = vmatpush1.msra.mxu0 0.0
    %91 = vmatprep.subr.mxu0 0.0
    %92 = vmatpush1.msra.mxu0 0.0
    %93 = vmatprep.subr.mxu0 0.0
    %94 = vmatpush1.msra.mxu0 0.0
    %95 = vmatprep.subr.mxu0 0.0
    %96 = vmatpush1.msra.mxu0 0.0
    %97 = vmatprep.subr.mxu0 0.0
    %98 = vmatpush1.msra.mxu0 0.0
    %99 = vmatprep.subr.mxu0 0.0
    %100 = vmatpush1.msra.mxu0 0.0
    %101 = vmatprep.subr.mxu0 0.0
    %102 = vmatpush1.msra.mxu0 0.0
    %103 = vmatprep.subr.mxu0 0.0
    %104 = vmatpush1.msra.mxu0 0.0
    %105 = vmatprep.subr.mxu0 0.0
    %106 = vmatpush1.msra.mxu0 0.0
    %107 = vmatprep.subr.mxu0 0.0
    %108 = vmatpush1.msra.mxu0 0.0
    %109 = vmatprep.subr.mxu0 0.0
    %110 = vmatpush1.msra.mxu0 0.0
    %111 = vmatprep.subr.mxu0 0.0
    %112 = vmatpush1.msra.mxu0 0.0
    %113 = vmatprep.subr.mxu0 0.0
    %114 = vmatpush1.msra.mxu0 0.0
    %115 = vmatprep.subr.mxu0 0.0
    %116 = vmatpush1.msra.mxu0 0.0
    %117 = vmatprep.subr.mxu0 0.0
    %118 = vmatpush1.msra.mxu0 0.0
    %119 = vmatprep.subr.mxu0 0.0
    %120 = vmatpush1.msra.mxu0 0.0
    %121 = vmatprep.subr.mxu0 0.0
    %122 = vmatpush1.msra.mxu0 0.0
    %123 = vmatprep.subr.mxu0 0.0
    %124 = vmatpush1.msra.mxu0 0.0
    %125 = vmatprep.subr.mxu0 0.0
    %126 = vmatpush1.msra.mxu0 0.0
    %127 = vmatprep.subr.mxu0 0.0
    %128 = vmatpush1.msra.mxu0 0.0
    %129 = vmatprep.subr.mxu0 0.0
    %130 = vmatpush1.msra.mxu0 0.0
    %131 = vmatprep.subr.mxu0 0.0
    %132 = vmatpush1.msra.mxu0 0.0
    %133 = vmatprep.subr.mxu0 0.0
    %134 = vmatpush1.msra.mxu0 0.0
    %135 = vmatprep.subr.mxu0 0.0
    %136 = vmatpush1.msra.mxu0 0.0
    %137 = vmatprep.subr.mxu0 0.0
    %138 = vmatpush1.msra.mxu0 0.0
    %139 = vmatprep.subr.mxu0 0.0
    %140 = vmatpush1.msra.mxu0 0.0
    %141 = vmatprep.subr.mxu0 0.0
    %142 = vmatpush1.msra.mxu0 0.0
    %143 = vmatprep.mubr.f32.mxu0 0.0
    %144 = vmatmul.mubr.f32.gmra.mrb[0].mxu0 %v74
    %v145 = vpop.f32.mrb[0].mxu0
    %v146 = vadd.f32 %v71, %v145
    %v147 = vpop.f32.mrb[0].mxu0
    %148 = vmatprep.mubr.f32.mxu0 0.0
    %149 = vmatmul.mubr.f32.gmra.mrb[0].mxu0 %v77
    %v150 = vpop.f32.mrb[0].mxu0
    %v151 = vadd.f32 %v71, %v150
    %v152 = vpop.f32.mrb[0].mxu0
    %153 = vdwg.mxu0
    %v154 = vld [vmem:[#allocation5] sm:$0xff]
    %v155 = vld [vmem:[#allocation5 + $0x8] sm:$0xff]
    %v156 = vadd.f32 %v146, %v154
    %v157 = vadd.f32 %v151, %v155
    %v158 = vsel %vm72, %v156, 0.0
    %159 = vadd.xlane.f32.xlu0 %v158
    %v160 = vpop.xlane.xlu0 %159
    %v161 = vsel %vm72, %v157, 0.0
    %162 = vadd.xlane.f32.xlu0 %v161
    %v163 = vpop.xlane.xlu0 %162
    %v164 = vrcp.pop 32.0
    %v165 = vmul.f32 %v160, %v164
    %v166 = vmul.f32 %v163, %v164
    %v167 = vmul.f32 %v156, %v156
    %v168 = vmul.f32 %v157, %v157
    %v169 = vsel %vm72, %v167, 0.0
    %170 = vadd.xlane.f32.xlu0 %v169
    %v171 = vpop.xlane.xlu0 %170
    %v172 = vsel %vm72, %v168, 0.0
    %173 = vadd.xlane.f32.xlu0 %v172
    %v174 = vpop.xlane.xlu0 %173
    %v175 = vmul.f32 %v171, %v164
    %v176 = vmul.f32 %v174, %v164
    %v177 = vmul.f32 %v165, %v165
    %v178 = vmul.f32 %v166, %v166
    %v179 = vsub.f32 %v175, %v177
    %v180 = vsub.f32 %v176, %v178
    %v181 = vmax.f32 %v179, 0.0
    %v182 = vmax.f32 %v180, 0.0
    %v183 = vsub.f32 %v156, %v165
    %v184 = vsub.f32 %v157, %v166
    %v185 = vadd.f32 %v181, 1e-12
    %v186 = vadd.f32 %v182, 1e-12
    %v187 = vrsqrt.pop %v185
    %v188 = vrsqrt.pop %v186
    %v189 = vmul.f32 %v183, %v187
    %v190 = vmul.f32 %v184, %v188
    %v191 = vlaneseq
    %v192 = vshrl.u32 %v191, 7
    %v193 = vsub.s32 0, %v192
    %v194 = vrot.slane %v66, %v193
    %v195 = vmul.f32 %v194, %v189
    %v196 = vmul.f32 %v194, %v190
    %v197 = vlaneseq
    %v198 = vshrl.u32 %v197, 7
    %v199 = vsub.s32 0, %v198
    %v200 = vrot.slane %v67, %v199
    %v201 = vadd.f32 %v195, %v200
    %v202 = vadd.f32 %v196, %v200
    %203 = vst.msk [vmem:[#allocation8] sm:$0xff] %vm72, %v201
    %204 = vst.msk [vmem:[#allocation8 + $0x8] sm:$0xff] %vm72, %v202
    // Predicated region
    $region30: #{tpu_custom_call.1} parent=1 // pred_check
      _
    $region31: #{tpu_custom_call.1} parent=1 // pred_check_branch
      %206 = sbr.rel (0) target = $region33
    $region32: #{tpu_custom_call.1} parent=1 // pred_region
      %s208 = ssub.s32 256, 256
      %209 = vsyncadd [#allocation4], %s208
      %s210 = sshll.u32 [#allocation8], 4
      %s211 = int_to_ptr.vmem [resolvable:$true] %s210
      %216 = dma.vmem_to_hbm [thread:$0]  %s211, 256, %s4, [#allocation4], 128, 128, 8
    $region33: #{tpu_custom_call.1} parent=1 // pred_fallthru
      _
    // Predicated region
    $region34: #{tpu_custom_call.1} parent=1 // pred_check
      _
    $region35: #{tpu_custom_call.1} parent=1 // pred_check_branch
      %218 = sbr.rel (0) target = $region37
    $region36: #{tpu_custom_call.1} parent=1 // pred_region
      %219 = dma.done [#allocation4], 256
    $region37: #{tpu_custom_call.1} parent=1 // pred_fallthru
      _
    %220 = vsyncpa [#allocation3], 1
    %221 = vsyncpa [#allocation6], 1
    %222 = vsyncpa [#allocation4], 1

</llo_original>
